<compile_context>
chip_gen: v7x
topology: tpu7x:2x2x1
jax: 0.10.0
libtpu: 0.0.40
codegen_flags: <defaults>
</compile_context>

<pallas_src>
import jax
import jax.numpy as jnp
from jax import lax
from jax.experimental import pallas as pl
from jax.experimental.pallas import tpu as pltpu


def _mlp_kernel(x_ref, w1_ref, b1_ref, w2_ref, b2_ref, w3_ref, b3_ref, o_ref):
    """One batch tile.  Internally transposed so the batch sits on the lane axis:
        out^T = W3 @ relu(W2 @ relu(W1 @ x^T + b1) + b2) + b3
    x_ref: (block_n, d_in) native layout; o_ref: (block_n, n_out) native layout.
    """
    x = x_ref[...]                                                 # (block_n, d_in)

    # h1^T = W1 @ x^T : contract the tiny K=d_in dim of both operands in-register.
    h1 = lax.dot_general(w1_ref[...], x, (((1,), (1,)), ((), ())),
                         preferred_element_type=jnp.float32)
    h1 = jnp.maximum(h1 + b1_ref[...], 0.0)                        # (n_hidden, block_n)

    h2 = jnp.dot(w2_ref[...], h1, preferred_element_type=jnp.float32)
    h2 = jnp.maximum(h2 + b2_ref[...], 0.0)                        # (n_hidden, block_n)

    out_t = jnp.dot(w3_ref[...], h2, preferred_element_type=jnp.float32) + b3_ref[...]
    # Tiny (n_out, block_n) -> (block_n, n_out) transpose on the XLU so the output
    # leaves the kernel in the caller's natural layout (no epilogue XLA copy).
    o_ref[...] = out_t.T.astype(o_ref.dtype)


def _round_up(v, m):
    return ((v + m - 1) // m) * m


def _tensorcores_per_chip():
    """Best-effort core count: 2 on dual-TC generations (v4/v5p/v7x), else 1."""
    try:
        kind = jax.devices()[0].device_kind.lower()
    except Exception:
        return 1
    if "lite" in kind or "v5e" in kind or "v6e" in kind or "v2" in kind or "v3" in kind:
        return 1
    if any(tag in kind for tag in ("v4", "v5p", "v7", "7x")):
        return 2
    return 1


_MAX_BLOCK_N = 512  # vreg-pressure cap: h1/h2 are (32, block_n) f32 live at once.


def _pick_block_n(n, n_tc):
    if n_tc >= 2 and n > 128:
        block = _round_up(-(-n // n_tc), 128)   # split into equal halves per core
    else:
        block = _round_up(n, 128)               # single grid step on 1-TC chips
    return max(128, min(block, _MAX_BLOCK_N))


@jax.jit
def net_forward(x, w1, b1, w2, b2, w3, b3):
    """x: (N, D_in).  Weights in PyTorch layout (fan_out, fan_in).  Biases: (fan_out,)."""
    n, d_in = x.shape
    n_hidden = w1.shape[0]
    n_out = w3.shape[0]

    block_n = _pick_block_n(n, _tensorcores_per_chip())
    grid = (pl.cdiv(n, block_n),)

    # Biases as VMEM columns -> free lane-broadcast add inside the kernel.
    b1c = b1.reshape(n_hidden, 1)
    b2c = b2.reshape(n_hidden, 1)
    b3c = b3.reshape(n_out, 1)

    in_specs = [
        pl.BlockSpec((block_n, d_in), lambda i: (i, 0)),        # x tile, native layout
        pl.BlockSpec((n_hidden, d_in), lambda i: (0, 0)),       # W1 (resident)
        pl.BlockSpec((n_hidden, 1), lambda i: (0, 0)),          # b1
        pl.BlockSpec((n_hidden, n_hidden), lambda i: (0, 0)),   # W2
        pl.BlockSpec((n_hidden, 1), lambda i: (0, 0)),          # b2
        pl.BlockSpec((n_out, n_hidden), lambda i: (0, 0)),      # W3
        pl.BlockSpec((n_out, 1), lambda i: (0, 0)),             # b3
    ]
    out_spec = pl.BlockSpec((block_n, n_out), lambda i: (i, 0))

    flops = 2 * n * (d_in * n_hidden + n_hidden * n_hidden + n_hidden * n_out)
    bytes_accessed = 4 * (
        n * d_in                                      # x
        + n_hidden * d_in + n_hidden                  # W1, b1
        + n_hidden * n_hidden + n_hidden              # W2, b2
        + n_out * n_hidden + n_out                    # W3, b3
        + n * n_out                                   # out
    )

    return pl.pallas_call(
        _mlp_kernel,
        out_shape=jax.ShapeDtypeStruct((n, n_out), x.dtype),
        grid_spec=pltpu.PrefetchScalarGridSpec(
            num_scalar_prefetch=0,
            grid=grid,
            in_specs=in_specs,
            out_specs=out_spec,
        ),
        compiler_params=pltpu.CompilerParams(
            dimension_semantics=("parallel",),
        ),
        cost_estimate=pl.CostEstimate(
            flops=flops, transcendentals=0, bytes_accessed=bytes_accessed
        ),
    )(x, w1, b1c, w2, b2c, w3, b3c)


def init_linear_params(key, fan_in, fan_out, dtype=jnp.float32):
    """Deterministic init mimicking torch.nn.Linear (uniform +-1/sqrt(fan_in)).
    Returns W in PyTorch layout (fan_out, fan_in) and bias as (fan_out,)."""
    kw, kb = jax.random.split(key)
    bound = 1.0 / (fan_in ** 0.5)
    w = jax.random.uniform(kw, (fan_out, fan_in), dtype, minval=-bound, maxval=bound)
    b = jax.random.uniform(kb, (fan_out,), dtype, minval=-bound, maxval=bound)
    return w, b


def reference_forward(x, w1, b1, w2, b2, w3, b3):
    h1 = jnp.maximum(x @ w1.T + b1, 0.0)
    h2 = jnp.maximum(h1 @ w2.T + b2, 0.0)
    return h2 @ w3.T + b3


if __name__ == "__main__":
    # Net(n_input=2, n_hidden=32, n_output=2).  batch=20 is deliberately NOT a
    # multiple of 8/128 to exercise the partial-block read/write-clipping path;
    # batch=500 matches the real workload (N=500) and exercises the multi-tile /
    # dual-core split path where present.
    n_input, n_hidden, n_output = 2, 32, 2

    key = jax.random.PRNGKey(0)
    kx, k1, k2, k3 = jax.random.split(key, 4)

    w1, b1 = init_linear_params(k1, n_input, n_hidden)
    w2, b2 = init_linear_params(k2, n_hidden, n_hidden)
    w3, b3 = init_linear_params(k3, n_hidden, n_output)

    for batch in (20, 500):
        x = jax.random.uniform(kx, (batch, n_input), jnp.float32,
                               minval=-10.0, maxval=10.0)
        out = net_forward(x, w1, b1, w2, b2, w3, b3)
        out = jax.block_until_ready(out)

        ref = reference_forward(x, w1, b1, w2, b2, w3, b3)
        assert out.shape == (batch, n_output)
        assert jnp.allclose(out, ref, atol=1e-4, rtol=1e-5), \
            f"mismatch vs reference at batch={batch}"

    print("KERNEL_OK")
</pallas_src>

<mosaic_0001>
module attributes {stable_mosaic.version = 11 : i64} {
  func.func @_mlp_kernel(%arg0: i32, %arg1: memref<128x2xf32, #tpu.memory_space<vmem>>, %arg2: memref<32x2xf32, #tpu.memory_space<vmem>>, %arg3: memref<32x1xf32, #tpu.memory_space<vmem>>, %arg4: memref<32x32xf32, #tpu.memory_space<vmem>>, %arg5: memref<32x1xf32, #tpu.memory_space<vmem>>, %arg6: memref<2x32xf32, #tpu.memory_space<vmem>>, %arg7: memref<2x1xf32, #tpu.memory_space<vmem>>, %arg8: memref<128x2xf32, #tpu.memory_space<vmem>>) attributes {dimension_semantics = [#tpu.dimension_semantics<parallel>], iteration_bounds = array<i64: 1>, scalar_prefetch = 0 : i64, scratch_operands = 0 : i64, tpu.core_type = #tpu.core_type<tc>, window_params = [{transform_indices = @transform_0, window_bounds = array<i64: 128, 2>}, {pipeline_mode = #tpu.pipeline_mode<synchronous>, transform_indices = @transform_1, window_bounds = array<i64: 32, 2>}, {pipeline_mode = #tpu.pipeline_mode<synchronous>, transform_indices = @transform_2, window_bounds = array<i64: 32, 1>}, {pipeline_mode = #tpu.pipeline_mode<synchronous>, transform_indices = @transform_3, window_bounds = array<i64: 32, 32>}, {pipeline_mode = #tpu.pipeline_mode<synchronous>, transform_indices = @transform_4, window_bounds = array<i64: 32, 1>}, {pipeline_mode = #tpu.pipeline_mode<synchronous>, transform_indices = @transform_5, window_bounds = array<i64: 2, 32>}, {pipeline_mode = #tpu.pipeline_mode<synchronous>, transform_indices = @transform_6, window_bounds = array<i64: 2, 1>}, {transform_indices = @transform_7, window_bounds = array<i64: 128, 2>}]} {
    %c0 = arith.constant 0 : index
    %c0_0 = arith.constant 0 : index
    %0 = vector.load %arg1[%c0, %c0_0] : memref<128x2xf32, #tpu.memory_space<vmem>>, vector<128x2xf32>
    %c0_1 = arith.constant 0 : index
    %c0_2 = arith.constant 0 : index
    %1 = vector.load %arg2[%c0_1, %c0_2] : memref<32x2xf32, #tpu.memory_space<vmem>>, vector<32x2xf32>
    %cst = arith.constant dense<0.000000e+00> : vector<32x128xf32>
    %2 = tpu.matmul %1, %0, %cst {dimension_numbers = #tpu.dot_dimension_numbers<[1], [1], [0], [0], [0, 0, 1, 0], [], []>} : vector<32x2xf32>, vector<128x2xf32>, vector<32x128xf32> -> vector<32x128xf32>
    %c0_3 = arith.constant 0 : index
    %c0_4 = arith.constant 0 : index
    %3 = vector.load %arg3[%c0_3, %c0_4] : memref<32x1xf32, #tpu.memory_space<vmem>>, vector<32x1xf32>
    %4 = vector.broadcast %3 : vector<32x1xf32> to vector<32x128xf32>
    %5 = arith.addf %2, %4 : vector<32x128xf32>
    %cst_5 = arith.constant 0.000000e+00 : f32
    %6 = vector.broadcast %cst_5 : f32 to vector<32x128xf32>
    %7 = arith.maximumf %5, %6 : vector<32x128xf32>
    %c0_6 = arith.constant 0 : index
    %c0_7 = arith.constant 0 : index
    %8 = vector.load %arg4[%c0_6, %c0_7] : memref<32x32xf32, #tpu.memory_space<vmem>>, vector<32x32xf32>
    %cst_8 = arith.constant dense<0.000000e+00> : vector<32x128xf32>
    %9 = tpu.matmul %8, %7, %cst_8 {dimension_numbers = #tpu.dot_dimension_numbers<[1], [0], [0], [1], [0, 0, 1, 1], [], []>} : vector<32x32xf32>, vector<32x128xf32>, vector<32x128xf32> -> vector<32x128xf32>
    %c0_9 = arith.constant 0 : index
    %c0_10 = arith.constant 0 : index
    %10 = vector.load %arg5[%c0_9, %c0_10] : memref<32x1xf32, #tpu.memory_space<vmem>>, vector<32x1xf32>
    %11 = vector.broadcast %10 : vector<32x1xf32> to vector<32x128xf32>
    %12 = arith.addf %9, %11 : vector<32x128xf32>
    %cst_11 = arith.constant 0.000000e+00 : f32
    %13 = vector.broadcast %cst_11 : f32 to vector<32x128xf32>
    %14 = arith.maximumf %12, %13 : vector<32x128xf32>
    %c0_12 = arith.constant 0 : index
    %c0_13 = arith.constant 0 : index
    %15 = vector.load %arg6[%c0_12, %c0_13] : memref<2x32xf32, #tpu.memory_space<vmem>>, vector<2x32xf32>
    %cst_14 = arith.constant dense<0.000000e+00> : vector<2x128xf32>
    %16 = tpu.matmul %15, %14, %cst_14 {dimension_numbers = #tpu.dot_dimension_numbers<[1], [0], [0], [1], [0, 0, 1, 1], [], []>} : vector<2x32xf32>, vector<32x128xf32>, vector<2x128xf32> -> vector<2x128xf32>
    %c0_15 = arith.constant 0 : index
    %c0_16 = arith.constant 0 : index
    %17 = vector.load %arg7[%c0_15, %c0_16] : memref<2x1xf32, #tpu.memory_space<vmem>>, vector<2x1xf32>
    %18 = vector.broadcast %17 : vector<2x1xf32> to vector<2x128xf32>
    %19 = arith.addf %16, %18 : vector<2x128xf32>
    %20 = tpu.transpose %19, [1, 0] : vector<2x128xf32> -> vector<128x2xf32>
    %c0_17 = arith.constant 0 : index
    %c0_18 = arith.constant 0 : index
    %21 = vector.load %arg8[%c0_17, %c0_18] : memref<128x2xf32, #tpu.memory_space<vmem>>, vector<128x2xf32>
    tpu.vector_store %arg8[%c0_17, %c0_18], %20 {strides = array<i32>} : memref<128x2xf32, #tpu.memory_space<vmem>>, vector<128x2xf32>,
    return
  }
  func.func @transform_0(%arg0: i32) -> (i32, i32) {
    %c0_i32 = arith.constant 0 : i32
    %c0_i32_0 = arith.constant 0 : i32
    return %arg0, %c0_i32 : i32, i32
  }
  func.func @transform_1(%arg0: i32) -> (i32, i32) {
    %c0_i32 = arith.constant 0 : i32
    %c0_i32_0 = arith.constant 0 : i32
    %c0_i32_1 = arith.constant 0 : i32
    return %c0_i32, %c0_i32_0 : i32, i32
  }
  func.func @transform_2(%arg0: i32) -> (i32, i32) {
    %c0_i32 = arith.constant 0 : i32
    %c0_i32_0 = arith.constant 0 : i32
    %c0_i32_1 = arith.constant 0 : i32
    return %c0_i32, %c0_i32_0 : i32, i32
  }
  func.func @transform_3(%arg0: i32) -> (i32, i32) {
    %c0_i32 = arith.constant 0 : i32
    %c0_i32_0 = arith.constant 0 : i32
    %c0_i32_1 = arith.constant 0 : i32
    return %c0_i32, %c0_i32_0 : i32, i32
  }
  func.func @transform_4(%arg0: i32) -> (i32, i32) {
    %c0_i32 = arith.constant 0 : i32
    %c0_i32_0 = arith.constant 0 : i32
    %c0_i32_1 = arith.constant 0 : i32
    return %c0_i32, %c0_i32_0 : i32, i32
  }
  func.func @transform_5(%arg0: i32) -> (i32, i32) {
    %c0_i32 = arith.constant 0 : i32
    %c0_i32_0 = arith.constant 0 : i32
    %c0_i32_1 = arith.constant 0 : i32
    return %c0_i32, %c0_i32_0 : i32, i32
  }
  func.func @transform_6(%arg0: i32) -> (i32, i32) {
    %c0_i32 = arith.constant 0 : i32
    %c0_i32_0 = arith.constant 0 : i32
    %c0_i32_1 = arith.constant 0 : i32
    return %c0_i32, %c0_i32_0 : i32, i32
  }
  func.func @transform_7(%arg0: i32) -> (i32, i32) {
    %c0_i32 = arith.constant 0 : i32
    %c0_i32_0 = arith.constant 0 : i32
    return %arg0, %c0_i32 : i32, i32
  }
}

</mosaic_0001>

<llo_original>
// kernel: net_forward.1
$region0: #{net_forward.1}
  #allocation0 [shape = 'u32[]', space=smem, size = 0x4, offset = 0x4, fixed_abs, tag = 'smem constant byte address 0x4 - core index']
  #allocation1 [shape = 'u32[144,128]{1,0:T(1,128)}', space=vmem, size = 0x12000, scoped, tag = 'internal scratch']
  %s0 = inlined_call_operand.vmem [shape: f32[20,2], index: 0, kind: input, shape index: {}]
  %s1 = inlined_call_operand.vmem [shape: f32[32,2], index: 1, kind: input, shape index: {}]
  %s2 = inlined_call_operand.vmem [shape: f32[32,1], index: 2, kind: input, shape index: {}]
  %s3 = inlined_call_operand.vmem [shape: f32[32,32], index: 3, kind: input, shape index: {}]
  %s4 = inlined_call_operand.vmem [shape: f32[32,1], index: 4, kind: input, shape index: {}]
  %s5 = inlined_call_operand.vmem [shape: f32[2,32], index: 5, kind: input, shape index: {}]
  %s6 = inlined_call_operand.vmem [shape: f32[2,1], index: 6, kind: input, shape index: {}]
  %s7 = inlined_call_operand.vmem [shape: f32[20,2], index: 7, kind: output, shape index: {}]
  %s8 = sld [smem:[#allocation0]]
  $region72: #{net_forward.1} parent=0
    _
  %s10 = ssub.s32 1, %s8
  %s11 = scalar_select 0, %s10, %s8
  $region1: #{net_forward.1} parent=0
    #allocation2 [shape = 'u8[65536]{0}', space=vmem, size = 0x10000, scoped, tag = 'output window, operand 0, single buffered']
    // Predicated region
    $region2: #{net_forward.1} parent=1 // pred_check
      _
    $region3: #{net_forward.1} parent=1 // pred_check_branch
      %13 = sbr.rel (0) target = $region5
    $region4: #{net_forward.1} parent=1 // pred_region
      _
    $region5: #{net_forward.1} parent=1 // pred_fallthru
      _
    // Predicated region
    $region6: #{net_forward.1} parent=1 // pred_check
      _
    $region7: #{net_forward.1} parent=1 // pred_check_branch
      %15 = sbr.rel (0) target = $region9
    $region8: #{net_forward.1} parent=1 // pred_region
      _
    $region9: #{net_forward.1} parent=1 // pred_fallthru
      _
    // Predicated region
    $region10: #{net_forward.1} parent=1 // pred_check
      _
    $region11: #{net_forward.1} parent=1 // pred_check_branch
      %17 = sbr.rel (0) target = $region13
    $region12: #{net_forward.1} parent=1 // pred_region
      _
    $region13: #{net_forward.1} parent=1 // pred_fallthru
      _
    // Predicated region
    $region14: #{net_forward.1} parent=1 // pred_check
      _
    $region15: #{net_forward.1} parent=1 // pred_check_branch
      %19 = sbr.rel (0) target = $region17
    $region16: #{net_forward.1} parent=1 // pred_region
      _
    $region17: #{net_forward.1} parent=1 // pred_fallthru
      _
    // Predicated region
    $region18: #{net_forward.1} parent=1 // pred_check
      _
    $region19: #{net_forward.1} parent=1 // pred_check_branch
      %21 = sbr.rel (0) target = $region21
    $region20: #{net_forward.1} parent=1 // pred_region
      _
    $region21: #{net_forward.1} parent=1 // pred_fallthru
      _
    // Predicated region
    $region22: #{net_forward.1} parent=1 // pred_check
      _
    $region23: #{net_forward.1} parent=1 // pred_check_branch
      %23 = sbr.rel (0) target = $region25
    $region24: #{net_forward.1} parent=1 // pred_region
      _
    $region25: #{net_forward.1} parent=1 // pred_fallthru
      _
    // Predicated region
    $region26: #{net_forward.1} parent=1 // pred_check
      _
    $region27: #{net_forward.1} parent=1 // pred_check_branch
      %25 = sbr.rel (0) target = $region29
    $region28: #{net_forward.1} parent=1 // pred_region
      _
    $region29: #{net_forward.1} parent=1 // pred_fallthru
      _
    %v26 = vld [vmem:[%s0] sm:$0xff]
    %v27 = vld [vmem:[%s0 + $0x8] sm:$0xff]
    %v28 = vld [vmem:[%s0 + $0x10] sm:$0xff]
    %v29 = vld [vmem:[%s0 + $0x18] sm:$0xff]
    %v30 = vld [vmem:[%s0 + $0x20] sm:$0xff]
    %v31 = vld [vmem:[%s0 + $0x28] sm:$0xff]
    %v32 = vld [vmem:[%s0 + $0x30] sm:$0xff]
    %v33 = vld [vmem:[%s0 + $0x38] sm:$0xff]
    %v34 = vld [vmem:[%s0 + $0x40] sm:$0xff]
    %v35 = vld [vmem:[%s0 + $0x48] sm:$0xff]
    %v36 = vld [vmem:[%s0 + $0x50] sm:$0xff]
    %v37 = vld [vmem:[%s0 + $0x58] sm:$0xff]
    %v38 = vld [vmem:[%s0 + $0x60] sm:$0xff]
    %v39 = vld [vmem:[%s0 + $0x68] sm:$0xff]
    %v40 = vld [vmem:[%s0 + $0x70] sm:$0xff]
    %v41 = vld [vmem:[%s0 + $0x78] sm:$0xff]
    %v42 = vld [vmem:[%s1] sm:$0xff]
    %v43 = vld [vmem:[%s1 + $0x8] sm:$0xff]
    %v44 = vld [vmem:[%s1 + $0x10] sm:$0xff]
    %v45 = vld [vmem:[%s1 + $0x18] sm:$0xff]
    %v46 = vld [vmem:[%s2] sm:$0xff]
    %v47 = vld [vmem:[%s2 + $0x8] sm:$0xff]
    %v48 = vld [vmem:[%s2 + $0x10] sm:$0xff]
    %v49 = vld [vmem:[%s2 + $0x18] sm:$0xff]
    %51 = vset.pattern.permute.xlu0 0
    %52 = vperm.xlu0 %51, %v46
    %v53 = vpop.permute.xlu0 %52
    %56 = vset.pattern.permute.xlu0 0
    %57 = vperm.xlu0 %56, %v47
    %v58 = vpop.permute.xlu0 %57
    %61 = vset.pattern.permute.xlu0 0
    %62 = vperm.xlu0 %61, %v48
    %v63 = vpop.permute.xlu0 %62
    %66 = vset.pattern.permute.xlu0 0
    %67 = vperm.xlu0 %66, %v49
    %v68 = vpop.permute.xlu0 %67
    %vm70 = vcmask 15360
    %v72 = vsel %vm70, %v42, 0
    %v75 = vsel %vm70, %v43, 0
    %v78 = vsel %vm70, %v44, 0
    %v81 = vsel %vm70, %v45, 0
    %v84 = vsel %vm70, %v26, 0
    %v87 = vsel %vm70, %v27, 0
    %v90 = vsel %vm70, %v28, 0
    %v93 = vsel %vm70, %v29, 0
    %v96 = vsel %vm70, %v30, 0
    %v99 = vsel %vm70, %v31, 0
    %v102 = vsel %vm70, %v32, 0
    %v105 = vsel %vm70, %v33, 0
    %v108 = vsel %vm70, %v34, 0
    %v111 = vsel %vm70, %v35, 0
    %v114 = vsel %vm70, %v36, 0
    %v117 = vsel %vm70, %v37, 0
    %v120 = vsel %vm70, %v38, 0
    %v123 = vsel %vm70, %v39, 0
    %v126 = vsel %vm70, %v40, 0
    %v129 = vsel %vm70, %v41, 0
    %131 = vmatprep.subr.mxu0 0.0
    %132 = vmatpush1.xpose.msra.mxu0 %v84
    %133 = vmatprep.subr.mxu0 0.0
    %134 = vmatpush1.xpose.msra.mxu0 %v87
    %135 = vmatprep.subr.mxu0 0.0
    %136 = vmatpush1.xpose.msra.mxu0 %v90
    %137 = vmatprep.subr.mxu0 0.0
    %138 = vmatpush1.xpose.msra.mxu0 %v93
    %139 = vmatprep.subr.mxu0 0.0
    %140 = vmatpush1.xpose.msra.mxu0 %v96
    %141 = vmatprep.subr.mxu0 0.0
    %142 = vmatpush1.xpose.msra.mxu0 %v99
    %143 = vmatprep.subr.mxu0 0.0
    %144 = vmatpush1.xpose.msra.mxu0 %v102
    %145 = vmatprep.subr.mxu0 0.0
    %146 = vmatpush1.xpose.msra.mxu0 %v105
    %147 = vmatprep.subr.mxu0 0.0
    %148 = vmatpush1.xpose.msra.mxu0 %v108
    %149 = vmatprep.subr.mxu0 0.0
    %150 = vmatpush1.xpose.msra.mxu0 %v111
    %151 = vmatprep.subr.mxu0 0.0
    %152 = vmatpush1.xpose.msra.mxu0 %v114
    %153 = vmatprep.subr.mxu0 0.0
    %154 = vmatpush1.xpose.msra.mxu0 %v117
    %155 = vmatprep.subr.mxu0 0.0
    %156 = vmatpush1.xpose.msra.mxu0 %v120
    %157 = vmatprep.subr.mxu0 0.0
    %158 = vmatpush1.xpose.msra.mxu0 %v123
    %159 = vmatprep.subr.mxu0 0.0
    %160 = vmatpush1.xpose.msra.mxu0 %v126
    %161 = vmatprep.subr.mxu0 0.0
    %162 = vmatpush1.xpose.msra.mxu0 %v129
    %163 = vmatprep.subr.mxu0 0.0
    %164 = vmatpush1.xpose.msra.mxu0 0.0
    %165 = vmatprep.subr.mxu0 0.0
    %166 = vmatpush1.xpose.msra.mxu0 0.0
    %167 = vmatprep.subr.mxu0 0.0
    %168 = vmatpush1.xpose.msra.mxu0 0.0
    %169 = vmatprep.subr.mxu0 0.0
    %170 = vmatpush1.xpose.msra.mxu0 0.0
    %171 = vmatprep.subr.mxu0 0.0
    %172 = vmatpush1.xpose.msra.mxu0 0.0
    %173 = vmatprep.subr.mxu0 0.0
    %174 = vmatpush1.xpose.msra.mxu0 0.0
    %175 = vmatprep.subr.mxu0 0.0
    %176 = vmatpush1.xpose.msra.mxu0 0.0
    %177 = vmatprep.subr.mxu0 0.0
    %178 = vmatpush1.xpose.msra.mxu0 0.0
    %179 = vmatprep.subr.mxu0 0.0
    %180 = vmatpush1.xpose.msra.mxu0 0.0
    %181 = vmatprep.subr.mxu0 0.0
    %182 = vmatpush1.xpose.msra.mxu0 0.0
    %183 = vmatprep.subr.mxu0 0.0
    %184 = vmatpush1.xpose.msra.mxu0 0.0
    %185 = vmatprep.subr.mxu0 0.0
    %186 = vmatpush1.xpose.msra.mxu0 0.0
    %187 = vmatprep.subr.mxu0 0.0
    %188 = vmatpush1.xpose.msra.mxu0 0.0
    %189 = vmatprep.subr.mxu0 0.0
    %190 = vmatpush1.xpose.msra.mxu0 0.0
    %191 = vmatprep.subr.mxu0 0.0
    %192 = vmatpush1.xpose.msra.mxu0 0.0
    %193 = vmatprep.subr.mxu0 0.0
    %194 = vmatpush1.xpose.msra.mxu0 0.0
    %195 = vmatprep.mubr.f32.mxu0 0.0
    %196 = vmatmul.mubr.f32.gmra.mrb[0].mxu0 %v72
    %v197 = vpop.f32.mrb[0].mxu0
    %v198 = vadd.f32 %v53, %v197
    %v199 = vpop.f32.mrb[0].mxu0
    %200 = vmatprep.mubr.f32.mxu0 0.0
    %201 = vmatmul.mubr.f32.gmra.mrb[0].mxu0 %v75
    %v202 = vpop.f32.mrb[0].mxu0
    %v203 = vadd.f32 %v58, %v202
    %v204 = vpop.f32.mrb[0].mxu0
    %205 = vmatprep.mubr.f32.mxu0 0.0
    %206 = vmatmul.mubr.f32.gmra.mrb[0].mxu0 %v78
    %v207 = vpop.f32.mrb[0].mxu0
    %v208 = vadd.f32 %v63, %v207
    %v209 = vpop.f32.mrb[0].mxu0
    %210 = vmatprep.mubr.f32.mxu0 0.0
    %211 = vmatmul.mubr.f32.gmra.mrb[0].mxu0 %v81
    %v212 = vpop.f32.mrb[0].mxu0
    %v213 = vadd.f32 %v68, %v212
    %v214 = vpop.f32.mrb[0].mxu0
    %215 = vdwg.mxu0
    %v216 = vmax.f32 %v198, 0.0
    %v217 = vmax.f32 %v203, 0.0
    %v218 = vmax.f32 %v208, 0.0
    %v219 = vmax.f32 %v213, 0.0
    %v220 = vld [vmem:[%s3] sm:$0xff]
    %v221 = vld [vmem:[%s3 + $0x8] sm:$0xff]
    %v222 = vld [vmem:[%s3 + $0x10] sm:$0xff]
    %v223 = vld [vmem:[%s3 + $0x18] sm:$0xff]
    %v224 = vld [vmem:[%s4] sm:$0xff]
    %v225 = vld [vmem:[%s4 + $0x8] sm:$0xff]
    %v226 = vld [vmem:[%s4 + $0x10] sm:$0xff]
    %v227 = vld [vmem:[%s4 + $0x18] sm:$0xff]
    %229 = vset.pattern.permute.xlu0 0
    %230 = vperm.xlu0 %229, %v224
    %v231 = vpop.permute.xlu0 %230
    %234 = vset.pattern.permute.xlu0 0
    %235 = vperm.xlu0 %234, %v225
    %v236 = vpop.permute.xlu0 %235
    %239 = vset.pattern.permute.xlu0 0
    %240 = vperm.xlu0 %239, %v226
    %v241 = vpop.permute.xlu0 %240
    %244 = vset.pattern.permute.xlu0 0
    %245 = vperm.xlu0 %244, %v227
    %v246 = vpop.permute.xlu0 %245
    %vm248 = vcmask 261120
    %v250 = vsel %vm248, %v220, 0
    %v253 = vsel %vm248, %v221, 0
    %v256 = vsel %vm248, %v222, 0
    %v259 = vsel %vm248, %v223, 0
    %261 = vmatprep.subr.mxu0 0.0
    %262 = vmatpush1.msra.mxu0 %v216
    %263 = vmatprep.subr.mxu0 0.0
    %264 = vmatpush1.msra.mxu0 %v217
    %265 = vmatprep.subr.mxu0 0.0
    %266 = vmatpush1.msra.mxu0 %v218
    %267 = vmatprep.subr.mxu0 0.0
    %268 = vmatpush1.msra.mxu0 %v219
    %269 = vmatprep.subr.mxu0 0.0
    %270 = vmatpush1.msra.mxu0 0.0
    %271 = vmatprep.subr.mxu0 0.0
    %272 = vmatpush1.msra.mxu0 0.0
    %273 = vmatprep.subr.mxu0 0.0
    %274 = vmatpush1.msra.mxu0 0.0
    %275 = vmatprep.subr.mxu0 0.0
    %276 = vmatpush1.msra.mxu0 0.0
    %277 = vmatprep.subr.mxu0 0.0
    %278 = vmatpush1.msra.mxu0 0.0
    %279 = vmatprep.subr.mxu0 0.0
    %280 = vmatpush1.msra.mxu0 0.0
    %281 = vmatprep.subr.mxu0 0.0
    %282 = vmatpush1.msra.mxu0 0.0
    %283 = vmatprep.subr.mxu0 0.0
    %284 = vmatpush1.msra.mxu0 0.0
    %285 = vmatprep.subr.mxu0 0.0
    %286 = vmatpush1.msra.mxu0 0.0
    %287 = vmatprep.subr.mxu0 0.0
    %288 = vmatpush1.msra.mxu0 0.0
    %289 = vmatprep.subr.mxu0 0.0
    %290 = vmatpush1.msra.mxu0 0.0
    %291 = vmatprep.subr.mxu0 0.0
    %292 = vmatpush1.msra.mxu0 0.0
    %293 = vmatprep.subr.mxu0 0.0
    %294 = vmatpush1.msra.mxu0 0.0
    %295 = vmatprep.subr.mxu0 0.0
    %296 = vmatpush1.msra.mxu0 0.0
    %297 = vmatprep.subr.mxu0 0.0
    %298 = vmatpush1.msra.mxu0 0.0
    %299 = vmatprep.subr.mxu0 0.0
    %300 = vmatpush1.msra.mxu0 0.0
    %301 = vmatprep.subr.mxu0 0.0
    %302 = vmatpush1.msra.mxu0 0.0
    %303 = vmatprep.subr.mxu0 0.0
    %304 = vmatpush1.msra.mxu0 0.0
    %305 = vmatprep.subr.mxu0 0.0
    %306 = vmatpush1.msra.mxu0 0.0
    %307 = vmatprep.subr.mxu0 0.0
    %308 = vmatpush1.msra.mxu0 0.0
    %309 = vmatprep.subr.mxu0 0.0
    %310 = vmatpush1.msra.mxu0 0.0
    %311 = vmatprep.subr.mxu0 0.0
    %312 = vmatpush1.msra.mxu0 0.0
    %313 = vmatprep.subr.mxu0 0.0
    %314 = vmatpush1.msra.mxu0 0.0
    %315 = vmatprep.subr.mxu0 0.0
    %316 = vmatpush1.msra.mxu0 0.0
    %317 = vmatprep.subr.mxu0 0.0
    %318 = vmatpush1.msra.mxu0 0.0
    %319 = vmatprep.subr.mxu0 0.0
    %320 = vmatpush1.msra.mxu0 0.0
    %321 = vmatprep.subr.mxu0 0.0
    %322 = vmatpush1.msra.mxu0 0.0
    %323 = vmatprep.subr.mxu0 0.0
    %324 = vmatpush1.msra.mxu0 0.0
    %325 = vmatprep.mubr.f32.mxu0 0.0
    %326 = vmatmul.mubr.f32.gmra.mrb[0].mxu0 %v250
    %v327 = vpop.f32.mrb[0].mxu0
    %v328 = vadd.f32 %v231, %v327
    %v329 = vpop.f32.mrb[0].mxu0
    %330 = vmatprep.mubr.f32.mxu0 0.0
    %331 = vmatmul.mubr.f32.gmra.mrb[0].mxu0 %v253
    %v332 = vpop.f32.mrb[0].mxu0
    %v333 = vadd.f32 %v236, %v332
    %v334 = vpop.f32.mrb[0].mxu0
    %335 = vmatprep.mubr.f32.mxu0 0.0
    %336 = vmatmul.mubr.f32.gmra.mrb[0].mxu0 %v256
    %v337 = vpop.f32.mrb[0].mxu0
    %v338 = vadd.f32 %v241, %v337
    %v339 = vpop.f32.mrb[0].mxu0
    %340 = vmatprep.mubr.f32.mxu0 0.0
    %341 = vmatmul.mubr.f32.gmra.mrb[0].mxu0 %v259
    %v342 = vpop.f32.mrb[0].mxu0
    %v343 = vadd.f32 %v246, %v342
    %v344 = vpop.f32.mrb[0].mxu0
    %345 = vdwg.mxu0
    %v346 = vmax.f32 %v328, 0.0
    %v347 = vmax.f32 %v333, 0.0
    %v348 = vmax.f32 %v338, 0.0
    %v349 = vmax.f32 %v343, 0.0
    %v350 = vld [vmem:[%s5] sm:$0x3]
    %v351 = vld [vmem:[%s6] sm:$0x3]
    %353 = vset.pattern.permute.xlu0 0
    %354 = vperm.xlu0 %353, %v351
    %v355 = vpop.permute.xlu0 %354
    %v358 = vsel %vm248, %v350, 0
    %360 = vmatprep.subr.mxu0 0.0
    %361 = vmatpush1.msra.mxu0 %v346
    %362 = vmatprep.subr.mxu0 0.0
    %363 = vmatpush1.msra.mxu0 %v347
    %364 = vmatprep.subr.mxu0 0.0
    %365 = vmatpush1.msra.mxu0 %v348
    %366 = vmatprep.subr.mxu0 0.0
    %367 = vmatpush1.msra.mxu0 %v349
    %368 = vmatprep.subr.mxu0 0.0
    %369 = vmatpush1.msra.mxu0 0.0
    %370 = vmatprep.subr.mxu0 0.0
    %371 = vmatpush1.msra.mxu0 0.0
    %372 = vmatprep.subr.mxu0 0.0
    %373 = vmatpush1.msra.mxu0 0.0
    %374 = vmatprep.subr.mxu0 0.0
    %375 = vmatpush1.msra.mxu0 0.0
    %376 = vmatprep.subr.mxu0 0.0
    %377 = vmatpush1.msra.mxu0 0.0
    %378 = vmatprep.subr.mxu0 0.0
    %379 = vmatpush1.msra.mxu0 0.0
    %380 = vmatprep.subr.mxu0 0.0
    %381 = vmatpush1.msra.mxu0 0.0
    %382 = vmatprep.subr.mxu0 0.0
    %383 = vmatpush1.msra.mxu0 0.0
    %384 = vmatprep.subr.mxu0 0.0
    %385 = vmatpush1.msra.mxu0 0.0
    %386 = vmatprep.subr.mxu0 0.0
    %387 = vmatpush1.msra.mxu0 0.0
    %388 = vmatprep.subr.mxu0 0.0
    %389 = vmatpush1.msra.mxu0 0.0
    %390 = vmatprep.subr.mxu0 0.0
    %391 = vmatpush1.msra.mxu0 0.0
    %392 = vmatprep.subr.mxu0 0.0
    %393 = vmatpush1.msra.mxu0 0.0
    %394 = vmatprep.subr.mxu0 0.0
    %395 = vmatpush1.msra.mxu0 0.0
    %396 = vmatprep.subr.mxu0 0.0
    %397 = vmatpush1.msra.mxu0 0.0
    %398 = vmatprep.subr.mxu0 0.0
    %399 = vmatpush1.msra.mxu0 0.0
    %400 = vmatprep.subr.mxu0 0.0
    %401 = vmatpush1.msra.mxu0 0.0
    %402 = vmatprep.subr.mxu0 0.0
    %403 = vmatpush1.msra.mxu0 0.0
    %404 = vmatprep.subr.mxu0 0.0
    %405 = vmatpush1.msra.mxu0 0.0
    %406 = vmatprep.subr.mxu0 0.0
    %407 = vmatpush1.msra.mxu0 0.0
    %408 = vmatprep.subr.mxu0 0.0
    %409 = vmatpush1.msra.mxu0 0.0
    %410 = vmatprep.subr.mxu0 0.0
    %411 = vmatpush1.msra.mxu0 0.0
    %412 = vmatprep.subr.mxu0 0.0
    %413 = vmatpush1.msra.mxu0 0.0
    %414 = vmatprep.subr.mxu0 0.0
    %415 = vmatpush1.msra.mxu0 0.0
    %416 = vmatprep.subr.mxu0 0.0
    %417 = vmatpush1.msra.mxu0 0.0
    %418 = vmatprep.subr.mxu0 0.0
    %419 = vmatpush1.msra.mxu0 0.0
    %420 = vmatprep.subr.mxu0 0.0
    %421 = vmatpush1.msra.mxu0 0.0
    %422 = vmatprep.subr.mxu0 0.0
    %423 = vmatpush1.msra.mxu0 0.0
    %424 = vmatprep.mubr.f32.mxu0 0.0
    %425 = vmatmul.mubr.f32.gmra.mrb[0].mxu0 %v358
    %v426 = vpop.f32.mrb[0].mxu0
    %v427 = vadd.f32 %v355, %v426
    %v428 = vpop.f32.mrb[0].mxu0
    %429 = vdwg.mxu0
    %430 = vxpose.xlu0.b32.start [1/16] %v427, 128
    %431 = vxpose.xlu0.b32.cont [2/16] 0.0, 128
    %432 = vxpose.xlu0.b32.cont [3/16] 0.0, 128
    %433 = vxpose.xlu0.b32.cont [4/16] 0.0, 128
    %434 = vxpose.xlu0.b32.cont [5/16] 0.0, 128
    %435 = vxpose.xlu0.b32.cont [6/16] 0.0, 128
    %436 = vxpose.xlu0.b32.cont [7/16] 0.0, 128
    %437 = vxpose.xlu0.b32.cont [8/16] 0.0, 128
    %438 = vxpose.xlu0.b32.cont [9/16] 0.0, 128
    %439 = vxpose.xlu0.b32.cont [10/16] 0.0, 128
    %440 = vxpose.xlu0.b32.cont [11/16] 0.0, 128
    %441 = vxpose.xlu0.b32.cont [12/16] 0.0, 128
    %442 = vxpose.xlu0.b32.cont [13/16] 0.0, 128
    %443 = vxpose.xlu0.b32.cont [14/16] 0.0, 128
    %444 = vxpose.xlu0.b32.cont [15/16] 0.0, 128
    %445 = vxpose.xlu0.b32.end [16/16] 0.0, 128
    %v446 = vpop.trf.xlu0
    %v447 = vpop.trf.xlu0
    %v448 = vpop.trf.xlu0
    %v449 = vpop.trf.xlu0
    %v450 = vpop.trf.xlu0
    %v451 = vpop.trf.xlu0
    %v452 = vpop.trf.xlu0
    %v453 = vpop.trf.xlu0
    %v454 = vpop.trf.xlu0
    %v455 = vpop.trf.xlu0
    %v456 = vpop.trf.xlu0
    %v457 = vpop.trf.xlu0
    %v458 = vpop.trf.xlu0
    %v459 = vpop.trf.xlu0
    %v460 = vpop.trf.xlu0
    %v461 = vpop.trf.xlu0
    %462 = vst.msk [vmem:[#allocation2] sm:$0xff] %vm70, %v446
    %463 = vst.msk [vmem:[#allocation2 + $0x8] sm:$0xff] %vm70, %v447
    %464 = vst.msk [vmem:[#allocation2 + $0x10] sm:$0xff] %vm70, %v448
    %465 = vst.msk [vmem:[#allocation2 + $0x18] sm:$0xff] %vm70, %v449
    %466 = vst.msk [vmem:[#allocation2 + $0x20] sm:$0xff] %vm70, %v450
    %467 = vst.msk [vmem:[#allocation2 + $0x28] sm:$0xff] %vm70, %v451
    %468 = vst.msk [vmem:[#allocation2 + $0x30] sm:$0xff] %vm70, %v452
    %469 = vst.msk [vmem:[#allocation2 + $0x38] sm:$0xff] %vm70, %v453
    %470 = vst.msk [vmem:[#allocation2 + $0x40] sm:$0xff] %vm70, %v454
    %471 = vst.msk [vmem:[#allocation2 + $0x48] sm:$0xff] %vm70, %v455
    %472 = vst.msk [vmem:[#allocation2 + $0x50] sm:$0xff] %vm70, %v456
    %473 = vst.msk [vmem:[#allocation2 + $0x58] sm:$0xff] %vm70, %v457
    %474 = vst.msk [vmem:[#allocation2 + $0x60] sm:$0xff] %vm70, %v458
    %475 = vst.msk [vmem:[#allocation2 + $0x68] sm:$0xff] %vm70, %v459
    %476 = vst.msk [vmem:[#allocation2 + $0x70] sm:$0xff] %vm70, %v460
    %477 = vst.msk [vmem:[#allocation2 + $0x78] sm:$0xff] %vm70, %v461
    // Predicated region
    $region30: #{net_forward.1} parent=1 // pred_check
      _
    $region31: #{net_forward.1} parent=1 // pred_check_branch
      %479 = sbr.rel (0) target = $region33
    $region32: #{net_forward.1} parent=1 // pred_region
      // Predicated region
      $region34: #{net_forward.1} parent=32 // pred_check
        _
      $region35: #{net_forward.1} parent=32 // pred_check_branch
        %481 = sbr.rel (0) target = $region37
      $region36: #{net_forward.1} parent=32 // pred_region
        // Predicated region
        $region38: #{net_forward.1} parent=36 // pred_check
          _
        $region39: #{net_forward.1} parent=36 // pred_check_branch
          %483 = sbr.rel (0) target = $region41
        $region40: #{net_forward.1} parent=36 // pred_region
          // Predicated region
          $region53: #{net_forward.1} parent=40 // pred_check
            _
          $region54: #{net_forward.1} parent=40 // pred_check_branch
            %502 = sbr.rel (0) target = $region56
          $region55: #{net_forward.1} parent=40 // pred_region
            loop: start=0, step=1, limit=1
            $region57: #{net_forward.1} parent=55 // loop_pre_header
              _
            $region58: #{net_forward.1} parent=55 // loop_header
              %s504 = sphi 0, %s508
              %p505 = scmp.ge.s32.totalorder %s504, 1
              %s509 = sphi [#allocation2], [#allocation2]
              %s510 = sphi %s7, %s7
            $region59: #{net_forward.1} parent=55 // loop_header_branch
              %507 = sbr.rel (%p505) target = $region63
            $region60: #{net_forward.1} parent=55 // loop_body
              %v511 = vld [vmem:[%s509] sm:$0xff]
              %512 = vst [vmem:[%s510] sm:$0xff] %v511
              %v513 = vld [vmem:[%s509 + $0x8] sm:$0xff]
              %514 = vst [vmem:[%s510 + $0x8] sm:$0xff] %v513
              %v515 = vld [vmem:[%s509 + $0x10] sm:$0xff]
              %516 = vst [vmem:[%s510 + $0x10] sm:$0xff] %v515
            $region61: #{net_forward.1} parent=55 // loop_footer
              %s508 = sadd.s32 1, %s504
            $region62: #{net_forward.1} parent=55 // loop_footer_branch
              %503 = sbr.rel target = $region58
            $region63: #{net_forward.1} parent=55 // loop_exit
              _
          $region56: #{net_forward.1} parent=40 // pred_fallthru
            _
          // Predicated region
          $region64: #{net_forward.1} parent=40 // pred_check
            _
          $region65: #{net_forward.1} parent=40 // pred_check_branch
            %518 = sbr.rel target = $region67
          $region66: #{net_forward.1} parent=40 // pred_region
            _
          $region67: #{net_forward.1} parent=40 // pred_fallthru
            _
        $region41: #{net_forward.1} parent=36 // pred_fallthru
          _
        // Predicated region
        $region42: #{net_forward.1} parent=36 // pred_check
          _
        $region43: #{net_forward.1} parent=36 // pred_check_branch
          %485 = sbr.rel target = $region45
        $region44: #{net_forward.1} parent=36 // pred_region
          loop: start=0, step=1, limit=1
          $region46: #{net_forward.1} parent=44 // loop_pre_header
            _
          $region47: #{net_forward.1} parent=44 // loop_header
            %s488 = sphi 0, %s492
            %p489 = scmp.ge.s32.totalorder %s488, 1
            %s493 = sphi [#allocation2], [#allocation2]
            %s494 = sphi %s7, %s7
          $region48: #{net_forward.1} parent=44 // loop_header_branch
            %491 = sbr.rel (%p489) target = $region52
          $region49: #{net_forward.1} parent=44 // loop_body
            %v495 = vld [vmem:[%s493] sm:$0xff]
            %496 = vst [vmem:[%s494] sm:$0xff] %v495
            %v497 = vld [vmem:[%s493 + $0x8] sm:$0xff]
            %498 = vst [vmem:[%s494 + $0x8] sm:$0xff] %v497
            %v499 = vld [vmem:[%s493 + $0x10] sm:$0xff]
            %500 = vst [vmem:[%s494 + $0x10] sm:$0xff] %v499
          $region50: #{net_forward.1} parent=44 // loop_footer
            %s492 = sadd.s32 1, %s488
          $region51: #{net_forward.1} parent=44 // loop_footer_branch
            %487 = sbr.rel target = $region47
          $region52: #{net_forward.1} parent=44 // loop_exit
            _
        $region45: #{net_forward.1} parent=36 // pred_fallthru
          _
      $region37: #{net_forward.1} parent=32 // pred_fallthru
        _
      %519 = vnop
    $region33: #{net_forward.1} parent=1 // pred_fallthru
      _
    // Predicated region
    $region68: #{net_forward.1} parent=1 // pred_check
      _
    $region69: #{net_forward.1} parent=1 // pred_check_branch
      %521 = sbr.rel (0) target = $region71
    $region70: #{net_forward.1} parent=1 // pred_region
      _
    $region71: #{net_forward.1} parent=1 // pred_fallthru
      _

</llo_original>
